<compile_context>
chip_gen: v7x
topology: tpu7x:2x2x1
jax: 0.10.0
libtpu: 0.0.40
codegen_flags: <defaults>
</compile_context>

<pallas_src>
import functools

import jax
import jax.numpy as jnp
import numpy as np
from jax.experimental import pallas as pl
from jax.experimental.pallas import tpu as pltpu

_SUBLANE = 8                       # sublane granularity for the batch axis
_MAX_BLOCK_B = 8192                # max rows per grid step
_VMEM_STREAM_BUDGET = 16 << 20     # bytes for double-buffered in/out streams
_VMEM_LIMIT_BYTES = 32 << 20       # scoped VMEM limit (safe on every gen)
_SPLIT_THRESHOLD_ROWS = 2048       # split into >=2 steps (v7x megacore) above this


def _round_up(n, m):
    return ((n + m - 1) // m) * m


def _cdiv(a, b):
    return (a + b - 1) // b


def _pick_block_b(b_rows, stream_row_bytes, resident_bytes):
    """Batch tile sized against a VMEM budget, multiple of 8, >=2 steps when big."""
    avail = max(_VMEM_STREAM_BUDGET - resident_bytes, _SUBLANE * stream_row_bytes)
    block_b = avail // stream_row_bytes
    block_b = max(_SUBLANE, (block_b // _SUBLANE) * _SUBLANE)
    block_b = min(block_b, _MAX_BLOCK_B, _round_up(b_rows, _SUBLANE))
    # v7x has 2 TensorCores per chip: when the whole batch fits one block but
    # there is real work, split it so dimension_semantics=("parallel",) can
    # shard it.  Harmless (single step) on 1-TC chips / tiny batches.
    if block_b >= b_rows and b_rows >= _SPLIT_THRESHOLD_ROWS:
        block_b = _round_up(_cdiv(b_rows, 2), _SUBLANE)
    return block_b


def xbnet_fused_kernel(x_ref, w_ref, b_ref, out_ref):
    # sigmoid(x @ W + b): bf16/f32 MXU operands, f32 accumulate, f32 sigmoid.
    logits = jnp.dot(x_ref[...], w_ref[...],
                     preferred_element_type=jnp.float32)
    logits = logits + b_ref[...]
    out_ref[...] = jax.nn.sigmoid(logits).astype(out_ref.dtype)


def xbnet_two_layer_kernel(x_ref, w1_ref, b1_ref, w2_ref, b2_ref, out_ref):
    # Unfused path (used when folding would inflate work, d_out > d_hidden).
    x = x_ref[...].astype(jnp.float32)
    h = jnp.dot(x, w1_ref[...], preferred_element_type=jnp.float32) + b1_ref[...]
    logits = jnp.dot(h, w2_ref[...],
                     preferred_element_type=jnp.float32) + b2_ref[...]
    out_ref[...] = jax.nn.sigmoid(logits).astype(out_ref.dtype)


@functools.partial(jax.jit, static_argnames=("use_bf16",))
def xbnet_forward(x, w1, b1, w2, b2, *, use_bf16=True):
    """Inference forward pass equivalent to XBNETClassifier.

    x:  [B, d_in]          w1: [d_in, d_hidden]   b1: [1, d_hidden]
    w2: [d_hidden, d_out]  b2: [1, d_out]
    Returns sigmoid((x @ w1 + b1) @ w2 + b2).
    """
    B, d_in = x.shape
    d_hidden = w1.shape[1]
    d_out = w2.shape[1]

    # --- Batch handling: no feature/output padding at all.  Only pad the
    #     batch to a sublane multiple when B % 8 != 0 (at most 7 rows). ---
    if B % _SUBLANE == 0:
        x_in, b_rows = x, B
    else:
        b_rows = _round_up(B, _SUBLANE)
        x_in = jnp.pad(x, ((0, b_rows - B), (0, 0)))

    in_dtype = jnp.bfloat16 if use_bf16 else jnp.float32
    in_bytes = 2 if use_bf16 else 4
    x_in = x_in.astype(in_dtype)

    # Fold the two Linears (valid here: no nonlinearity between them, Sigmoid
    # only at the end) when it shrinks weights/FLOPs.  NOTE: if the module
    # config ever inserts per-layer activations, the fold must not be used.
    fuse = d_out <= d_hidden

    if fuse:
        w = jnp.dot(w1.astype(jnp.float32), w2.astype(jnp.float32),
                    preferred_element_type=jnp.float32)              # [d_in, d_out]
        b = (jnp.dot(b1.astype(jnp.float32), w2.astype(jnp.float32),
                     preferred_element_type=jnp.float32)
             + b2.astype(jnp.float32))                               # [1, d_out]
        w = w.astype(in_dtype)

        kernel = xbnet_fused_kernel
        operands = (x_in, w, b)
        resident_bytes = d_in * d_out * in_bytes + d_out * 4
        stream_row_bytes = 2 * d_in * in_bytes + 2 * d_out * 4
        block_b = _pick_block_b(b_rows, stream_row_bytes, resident_bytes)
        in_specs = [
            # activations: tiled over batch; last dim == full array dim (no K pad)
            pl.BlockSpec((block_b, d_in), lambda i: (i, 0)),
            # folded weight / bias: resident every grid step (constant index map)
            # TODO(synk): for very large d_in consider pipeline_mode=pl.Buffered(1)
            # here to halve resident weight VMEM on v7x.
            pl.BlockSpec((d_in, d_out), lambda i: (0, 0)),
            pl.BlockSpec((1, d_out), lambda i: (0, 0)),
        ]
    else:
        kernel = xbnet_two_layer_kernel
        operands = (x_in,
                    w1.astype(jnp.float32), b1.astype(jnp.float32),
                    w2.astype(jnp.float32), b2.astype(jnp.float32))
        resident_bytes = 4 * (d_in * d_hidden + d_hidden + d_hidden * d_out + d_out)
        stream_row_bytes = (2 * d_in * in_bytes + 2 * d_out * 4 + d_hidden * 4)
        block_b = _pick_block_b(b_rows, stream_row_bytes, resident_bytes)
        in_specs = [
            pl.BlockSpec((block_b, d_in), lambda i: (i, 0)),
            pl.BlockSpec((d_in, d_hidden), lambda i: (0, 0)),
            pl.BlockSpec((1, d_hidden), lambda i: (0, 0)),
            pl.BlockSpec((d_hidden, d_out), lambda i: (0, 0)),
            pl.BlockSpec((1, d_out), lambda i: (0, 0)),
        ]

    grid = (_cdiv(b_rows, block_b),)   # partial last block OK: rows independent

    out = pl.pallas_call(
        kernel,
        out_shape=jax.ShapeDtypeStruct((b_rows, d_out), jnp.float32),
        grid=grid,
        in_specs=in_specs,
        out_specs=pl.BlockSpec((block_b, d_out), lambda i: (i, 0)),
        compiler_params=pltpu.CompilerParams(
            dimension_semantics=("parallel",),
            vmem_limit_bytes=_VMEM_LIMIT_BYTES),
    )(*operands)

    return out if b_rows == B else out[:B]


def make_params(key, d_in, d_hidden, d_out, epsilon=0.001):
    """Deterministic parameter init mirroring XBNETClassifier.__init__.

    Layer-0 weight mimics base_tree(): a per-feature "importance" vector
    (non-negative, sums to 1) + epsilon, column-stacked across d_hidden units.
    Other params use PyTorch Linear default uniform init.
    """
    k_imp, k_b1, k_w2, k_b2 = jax.random.split(key, 4)

    imp = jax.nn.softmax(jax.random.normal(k_imp, (d_in,), jnp.float32))
    w1 = jnp.tile((imp + epsilon)[:, None], (1, d_hidden))        # [d_in, d_hidden]

    lim1 = 1.0 / np.sqrt(d_in)
    b1 = jax.random.uniform(k_b1, (1, d_hidden), jnp.float32, -lim1, lim1)

    lim2 = 1.0 / np.sqrt(d_hidden)
    w2 = jax.random.uniform(k_w2, (d_hidden, d_out), jnp.float32, -lim2, lim2)
    b2 = jax.random.uniform(k_b2, (1, d_out), jnp.float32, -lim2, lim2)
    return w1, b1, w2, b2


def reference_forward(x, w1, b1, w2, b2):
    h = x @ w1 + b1
    logits = h @ w2 + b2
    return jax.nn.sigmoid(logits)


if __name__ == "__main__":
    # Small shapes implied by the module: tabular [batch, features] input,
    # two Linear layers + Sigmoid head.
    B, D_IN, D_HID, D_OUT = 16, 16, 32, 8

    key = jax.random.PRNGKey(0)
    k_x, k_p = jax.random.split(key)
    x = jax.random.normal(k_x, (B, D_IN), jnp.float32)
    w1, b1, w2, b2 = make_params(k_p, D_IN, D_HID, D_OUT)
    ref = reference_forward(x, w1, b1, w2, b2)

    # 1) fused path, f32 operands (exact check)
    out_f32 = jax.block_until_ready(
        xbnet_forward(x, w1, b1, w2, b2, use_bf16=False))
    np.testing.assert_allclose(np.asarray(out_f32), np.asarray(ref),
                               rtol=1e-5, atol=1e-5)

    # 2) fused path, bf16 operands (default; looser tolerance for bf16 rounding)
    out_bf16 = jax.block_until_ready(xbnet_forward(x, w1, b1, w2, b2))
    np.testing.assert_allclose(np.asarray(out_bf16), np.asarray(ref),
                               rtol=2e-2, atol=2e-2)

    # 3) unfused path (d_out > d_hidden disables the fold)
    D_HID2, D_OUT2 = 8, 32
    w1b, b1b, w2b, b2b = make_params(k_p, D_IN, D_HID2, D_OUT2)
    ref2 = reference_forward(x, w1b, b1b, w2b, b2b)
    out2 = jax.block_until_ready(xbnet_forward(x, w1b, b1b, w2b, b2b))
    np.testing.assert_allclose(np.asarray(out2), np.asarray(ref2),
                               rtol=2e-2, atol=2e-2)

    # TODO(synk): the train-time XGBoost.fit side effect inside Seq.forward
    # (recording feature_importances_ per boosted layer) has no Pallas
    # equivalent and does not affect the forward math, so it is omitted.
    print("KERNEL_OK")
</pallas_src>

<mosaic_0001>
module attributes {stable_mosaic.version = 11 : i64} {
  func.func @xbnet_fused_kernel(%arg0: i32, %arg1: memref<16x16xf32, #tpu.memory_space<vmem>>, %arg2: memref<16x8xf32, #tpu.memory_space<vmem>>, %arg3: memref<1x8xf32, #tpu.memory_space<vmem>>, %arg4: memref<16x8xf32, #tpu.memory_space<vmem>>) attributes {dimension_semantics = [#tpu.dimension_semantics<parallel>], iteration_bounds = array<i64: 1>, scalar_prefetch = 0 : i64, scratch_operands = 0 : i64, tpu.core_type = #tpu.core_type<tc>, window_params = [{transform_indices = @transform_0, window_bounds = array<i64: 16, 16>}, {pipeline_mode = #tpu.pipeline_mode<synchronous>, transform_indices = @transform_1, window_bounds = array<i64: 16, 8>}, {pipeline_mode = #tpu.pipeline_mode<synchronous>, transform_indices = @transform_2, window_bounds = array<i64: 1, 8>}, {transform_indices = @transform_3, window_bounds = array<i64: 16, 8>}]} {
    %c0 = arith.constant 0 : index
    %c0_0 = arith.constant 0 : index
    %0 = vector.load %arg1[%c0, %c0_0] : memref<16x16xf32, #tpu.memory_space<vmem>>, vector<16x16xf32>
    %c0_1 = arith.constant 0 : index
    %c0_2 = arith.constant 0 : index
    %1 = vector.load %arg2[%c0_1, %c0_2] : memref<16x8xf32, #tpu.memory_space<vmem>>, vector<16x8xf32>
    %cst = arith.constant dense<0.000000e+00> : vector<16x8xf32>
    %2 = tpu.matmul %0, %1, %cst {dimension_numbers = #tpu.dot_dimension_numbers<[1], [0], [0], [1], [0, 0, 1, 1], [], []>} : vector<16x16xf32>, vector<16x8xf32>, vector<16x8xf32> -> vector<16x8xf32>
    %c0_3 = arith.constant 0 : index
    %c0_4 = arith.constant 0 : index
    %3 = vector.load %arg3[%c0_3, %c0_4] : memref<1x8xf32, #tpu.memory_space<vmem>>, vector<1x8xf32>
    %4 = vector.broadcast %3 : vector<1x8xf32> to vector<16x8xf32>
    %5 = arith.addf %2, %4 : vector<16x8xf32>
    %6 = arith.negf %5 : vector<16x8xf32>
    %7 = math.exp %6 : vector<16x8xf32>
    %cst_5 = arith.constant 1.000000e+00 : f32
    %8 = vector.broadcast %cst_5 : f32 to vector<16x8xf32>
    %9 = arith.addf %8, %7 : vector<16x8xf32>
    %10 = arith.divf %8, %9 : vector<16x8xf32>
    %c0_6 = arith.constant 0 : index
    %c0_7 = arith.constant 0 : index
    %11 = vector.load %arg4[%c0_6, %c0_7] : memref<16x8xf32, #tpu.memory_space<vmem>>, vector<16x8xf32>
    tpu.vector_store %arg4[%c0_6, %c0_7], %10 {strides = array<i32>} : memref<16x8xf32, #tpu.memory_space<vmem>>, vector<16x8xf32>,
    return
  }
  func.func @transform_0(%arg0: i32) -> (i32, i32) {
    %c0_i32 = arith.constant 0 : i32
    %c0_i32_0 = arith.constant 0 : i32
    return %arg0, %c0_i32 : i32, i32
  }
  func.func @transform_1(%arg0: i32) -> (i32, i32) {
    %c0_i32 = arith.constant 0 : i32
    %c0_i32_0 = arith.constant 0 : i32
    %c0_i32_1 = arith.constant 0 : i32
    return %c0_i32, %c0_i32_0 : i32, i32
  }
  func.func @transform_2(%arg0: i32) -> (i32, i32) {
    %c0_i32 = arith.constant 0 : i32
    %c0_i32_0 = arith.constant 0 : i32
    %c0_i32_1 = arith.constant 0 : i32
    return %c0_i32, %c0_i32_0 : i32, i32
  }
  func.func @transform_3(%arg0: i32) -> (i32, i32) {
    %c0_i32 = arith.constant 0 : i32
    %c0_i32_0 = arith.constant 0 : i32
    return %arg0, %c0_i32 : i32, i32
  }
}

</mosaic_0001>

<llo_original>
// kernel: xbnet_forward.1
$region0: #{xbnet_forward.1}
  #allocation0 [shape = 'u32[]', space=smem, size = 0x4, offset = 0x4, fixed_abs, tag = 'smem constant byte address 0x4 - core index']
  #allocation1 [shape = 'u32[144,128]{1,0:T(1,128)}', space=vmem, size = 0x12000, scoped, tag = 'internal scratch']
  %s0 = inlined_call_operand.vmem [shape: f32[16,16], index: 0, kind: input, shape index: {}]
  %s1 = inlined_call_operand.vmem [shape: f32[16,8], index: 1, kind: input, shape index: {}]
  %s2 = inlined_call_operand.vmem [shape: f32[1,8], index: 2, kind: input, shape index: {}]
  %s3 = inlined_call_operand.vmem [shape: f32[16,8], index: 3, kind: output, shape index: {}]
  %s4 = sld [smem:[#allocation0]]
  $region22: #{xbnet_forward.1} parent=0
    _
  %s6 = ssub.s32 1, %s4
  %s7 = scalar_select 0, %s6, %s4
  // Predicated region
  $region2: #{xbnet_forward.1} parent=0 // pred_check
    _
  $region3: #{xbnet_forward.1} parent=0 // pred_check_branch
    %9 = sbr.rel (0) target = $region5
  $region4: #{xbnet_forward.1} parent=0 // pred_region
    _
  $region5: #{xbnet_forward.1} parent=0 // pred_fallthru
    _
  // Predicated region
  $region6: #{xbnet_forward.1} parent=0 // pred_check
    _
  $region7: #{xbnet_forward.1} parent=0 // pred_check_branch
    %11 = sbr.rel (0) target = $region9
  $region8: #{xbnet_forward.1} parent=0 // pred_region
    _
  $region9: #{xbnet_forward.1} parent=0 // pred_fallthru
    _
  // Predicated region
  $region10: #{xbnet_forward.1} parent=0 // pred_check
    _
  $region11: #{xbnet_forward.1} parent=0 // pred_check_branch
    %13 = sbr.rel (0) target = $region13
  $region12: #{xbnet_forward.1} parent=0 // pred_region
    _
  $region13: #{xbnet_forward.1} parent=0 // pred_fallthru
    _
  %v14 = vld [vmem:[%s0] sm:$0xff]
  %v15 = vld [vmem:[%s0 + $0x8] sm:$0xff]
  %v16 = vld [vmem:[%s1] sm:$0xff]
  %v17 = vld [vmem:[%s1 + $0x8] sm:$0xff]
  %v18 = vld [vmem:[%s2] sm:$0x1]
  %v20 = vlaneseq
  %v21 = vshrl.u32 %v20, 7
  %v22 = vsub.s32 0, %v21
  %v23 = vrot.slane %v18, %v22
  %vm25 = vcmask 130048
  %v27 = vsel %vm25, %v14, 0
  %v30 = vsel %vm25, %v15, 0
  %32 = vmatprep.subr.mxu0 0.0
  %33 = vmatpush1.msra.mxu0 %v16
  %34 = vmatprep.subr.mxu0 0.0
  %35 = vmatpush1.msra.mxu0 %v17
  %36 = vmatprep.subr.mxu0 0.0
  %37 = vmatpush1.msra.mxu0 0.0
  %38 = vmatprep.subr.mxu0 0.0
  %39 = vmatpush1.msra.mxu0 0.0
  %40 = vmatprep.subr.mxu0 0.0
  %41 = vmatpush1.msra.mxu0 0.0
  %42 = vmatprep.subr.mxu0 0.0
  %43 = vmatpush1.msra.mxu0 0.0
  %44 = vmatprep.subr.mxu0 0.0
  %45 = vmatpush1.msra.mxu0 0.0
  %46 = vmatprep.subr.mxu0 0.0
  %47 = vmatpush1.msra.mxu0 0.0
  %48 = vmatprep.subr.mxu0 0.0
  %49 = vmatpush1.msra.mxu0 0.0
  %50 = vmatprep.subr.mxu0 0.0
  %51 = vmatpush1.msra.mxu0 0.0
  %52 = vmatprep.subr.mxu0 0.0
  %53 = vmatpush1.msra.mxu0 0.0
  %54 = vmatprep.subr.mxu0 0.0
  %55 = vmatpush1.msra.mxu0 0.0
  %56 = vmatprep.subr.mxu0 0.0
  %57 = vmatpush1.msra.mxu0 0.0
  %58 = vmatprep.subr.mxu0 0.0
  %59 = vmatpush1.msra.mxu0 0.0
  %60 = vmatprep.subr.mxu0 0.0
  %61 = vmatpush1.msra.mxu0 0.0
  %62 = vmatprep.subr.mxu0 0.0
  %63 = vmatpush1.msra.mxu0 0.0
  %64 = vmatprep.subr.mxu0 0.0
  %65 = vmatpush1.msra.mxu0 0.0
  %66 = vmatprep.subr.mxu0 0.0
  %67 = vmatpush1.msra.mxu0 0.0
  %68 = vmatprep.subr.mxu0 0.0
  %69 = vmatpush1.msra.mxu0 0.0
  %70 = vmatprep.subr.mxu0 0.0
  %71 = vmatpush1.msra.mxu0 0.0
  %72 = vmatprep.subr.mxu0 0.0
  %73 = vmatpush1.msra.mxu0 0.0
  %74 = vmatprep.subr.mxu0 0.0
  %75 = vmatpush1.msra.mxu0 0.0
  %76 = vmatprep.subr.mxu0 0.0
  %77 = vmatpush1.msra.mxu0 0.0
  %78 = vmatprep.subr.mxu0 0.0
  %79 = vmatpush1.msra.mxu0 0.0
  %80 = vmatprep.subr.mxu0 0.0
  %81 = vmatpush1.msra.mxu0 0.0
  %82 = vmatprep.subr.mxu0 0.0
  %83 = vmatpush1.msra.mxu0 0.0
  %84 = vmatprep.subr.mxu0 0.0
  %85 = vmatpush1.msra.mxu0 0.0
  %86 = vmatprep.subr.mxu0 0.0
  %87 = vmatpush1.msra.mxu0 0.0
  %88 = vmatprep.subr.mxu0 0.0
  %89 = vmatpush1.msra.mxu0 0.0
  %90 = vmatprep.subr.mxu0 0.0
  %91 = vmatpush1.msra.mxu0 0.0
  %92 = vmatprep.subr.mxu0 0.0
  %93 = vmatpush1.msra.mxu0 0.0
  %94 = vmatprep.subr.mxu0 0.0
  %95 = vmatpush1.msra.mxu0 0.0
  %96 = vmatprep.mubr.f32.mxu0 0.0
  %97 = vmatmul.mubr.f32.gmra.mrb[0].mxu0 %v27
  %v98 = vpop.f32.mrb[0].mxu0
  %v99 = vadd.f32 %v23, %v98
  %v100 = vpop.f32.mrb[0].mxu0
  %101 = vmatprep.mubr.f32.mxu0 0.0
  %102 = vmatmul.mubr.f32.gmra.mrb[0].mxu0 %v30
  %v103 = vpop.f32.mrb[0].mxu0
  %v104 = vadd.f32 %v23, %v103
  %v105 = vpop.f32.mrb[0].mxu0
  %106 = vdwg.mxu0
  %v107 = vxor.u32 %v99, 2147483648
  %v108 = vxor.u32 %v104, 2147483648
  %v109 = vmul.f32 %v107, 1.442695
  %v110 = vpow.pop %v109
  %v111 = vmul.f32 %v108, 1.442695
  %v112 = vpow.pop %v111
  %v113 = vadd.f32 %v110, 1.0
  %v114 = vadd.f32 %v112, 1.0
  %v115 = vrcp.pop %v113
  %v116 = vmul.f32 1.0, %v115
  %v117 = vrcp.pop %v114
  %v118 = vmul.f32 1.0, %v117
  %vm119 = vcmask 64512
  %120 = vst.msk [vmem:[%s3] sm:$0xff] %vm119, %v116
  %121 = vst.msk [vmem:[%s3 + $0x8] sm:$0xff] %vm119, %v118
  // Predicated region
  $region14: #{xbnet_forward.1} parent=0 // pred_check
    _
  $region15: #{xbnet_forward.1} parent=0 // pred_check_branch
    %123 = sbr.rel (0) target = $region17
  $region16: #{xbnet_forward.1} parent=0 // pred_region
    _
  $region17: #{xbnet_forward.1} parent=0 // pred_fallthru
    _
  // Predicated region
  $region18: #{xbnet_forward.1} parent=0 // pred_check
    _
  $region19: #{xbnet_forward.1} parent=0 // pred_check_branch
    %125 = sbr.rel (0) target = $region21
  $region20: #{xbnet_forward.1} parent=0 // pred_region
    _
  $region21: #{xbnet_forward.1} parent=0 // pred_fallthru
    _

</llo_original>
